<compile_context>
chip_gen: v7x
topology: tpu7x:2x2x1
jax: 0.10.0
libtpu: 0.0.40
codegen_flags: <defaults>
</compile_context>

<pallas_src>
import functools

import jax
import jax.numpy as jnp
from jax.experimental import pallas as pl
from jax.experimental.pallas import tpu as pltpu

EPS = 1e-5


def _elu(x):
    # ELU, alpha = 1 (PyTorch default).  min() avoids evaluating exp of large
    # positives in the unselected branch.  (expm1 would be marginally more accurate
    # near 0 but exp-1 is guaranteed to lower on Mosaic.)
    return jnp.where(x > 0, x, jnp.exp(jnp.minimum(x, 0.0)) - 1.0)


def make_resblock_kernel(*, N, L, Lp, P, K):
    """Kernel body with static geometry baked in."""
    NLp = N * Lp
    inv_cnt = 1.0 / float(N * L)

    def bn_fold(h, gamma, beta):
        # Training-mode BN, one reduction pass (E[x^2] - E[x]^2), folded scale/shift.
        # Tail lanes of h are exactly zero, so unmasked sums == sums over (N, L).
        mu = jnp.sum(h, axis=1, keepdims=True) * inv_cnt
        ex2 = jnp.sum(h * h, axis=1, keepdims=True) * inv_cnt
        scale = gamma * jax.lax.rsqrt(ex2 - mu * mu + EPS)      # rsqrt -> EUP slot
        shift = beta - mu * scale
        return h * scale + shift                                 # one FMA / element

    def kernel(xcol_ref, tapm_ref, xres_ref, w1_ref, g1_ref, be1_ref,
               w2_ref, g2_ref, be2_ref, o_ref):
        # xcol_ref : (K*Cin, N*Lp) bf16  im2col operand (built in the wrapper)
        # tapm_ref : (K, 1, N*Lp) f32    per-tap validity masks for conv2
        # xres_ref : (Cin, N*Lp) f32     residual input (zero lane tail)
        # w*_ref   : (Cout, K*Cin) bf16  im2col-layout conv weights
        # g*/be*   : (C, 1) f32          BN gamma / beta
        # o_ref    : (Cin, N*Lp) f32

        # ---- conv1: single im2col matmul (bias dropped: cancelled by BN mean) ----
        h = jnp.dot(w1_ref[...], xcol_ref[...], preferred_element_type=jnp.float32)
        h = _elu(bn_fold(h, g1_ref[...], be1_ref[...]))

        # ---- conv2: im2col built in-kernel with lane rolls + boundary masks ------
        def shifted(k):
            s = (P - k) % NLp                                   # rolled[j] = h[j+k-P]
            return h if s == 0 else pltpu.roll(h, shift=s, axis=1)

        taps = [shifted(k) * tapm_ref[k] for k in range(K)]      # masked valid reads
        op2 = jnp.concatenate(taps, axis=0).astype(jnp.bfloat16)  # (K*Cmid, N*Lp)
        o = jnp.dot(w2_ref[...], op2, preferred_element_type=jnp.float32)
        o = bn_fold(o, g2_ref[...], be2_ref[...])

        # ---- residual add + ELU (lane tail is don't-care, sliced off outside) ----
        o_ref[...] = _elu(o + xres_ref[...])

    return kernel


def resblock_forward(x_ncl, params, *, padding):
    """x_ncl: (N, C, L) float32, PyTorch Conv1d layout.  stride fixed to 1."""
    N, Cin, L = x_ncl.shape
    K = params["w1"].shape[2]
    P = padding
    Lp = ((L + 127) // 128) * 128           # 128-aligned lane window per batch
    NLp = N * Lp
    f32, bf16 = jnp.float32, jnp.bfloat16

    # ----------------- layout plumbing (plain JAX, fused by XLA) -----------------
    x_cnl = jnp.transpose(x_ncl, (1, 0, 2)).astype(f32)          # (Cin, N, L)
    tail = ((0, 0), (0, 0), (0, Lp - L))

    # residual operand with an exactly-zero lane tail
    xres = jnp.pad(x_cnl, tail).reshape(Cin, NLp)

    # conv1 im2col operand: row k*Cin+i holds x[i] shifted by (k - P); both the
    # conv zero-padding and the lane tail are exact zeros.
    xpad = jnp.pad(x_cnl, ((0, 0), (0, 0), (P, P)))              # (Cin, N, L+2P)
    cols = [jnp.pad(xpad[:, :, k:k + L], tail) for k in range(K)]
    xcol = jnp.concatenate(cols, axis=0).reshape(K * Cin, NLp).astype(bf16)

    # per-tap validity masks for the in-kernel rolled im2col of conv2
    l_idx = jnp.arange(Lp)
    masks = [jnp.tile((l_idx < L) & (l_idx + (k - P) >= 0) & (l_idx + (k - P) < L),
                      (N,)) for k in range(K)]
    tapm = jnp.stack(masks, axis=0).astype(f32).reshape(K, 1, NLp)

    # weights in im2col layout (Cout, K*Cin), bf16 for the MXU; BN params as (C, 1)
    w2d = lambda w: jnp.transpose(w, (0, 2, 1)).reshape(w.shape[0], -1).astype(bf16)
    col = lambda p: p.reshape(-1, 1).astype(f32)

    kernel = make_resblock_kernel(N=N, L=L, Lp=Lp, P=P, K=K)
    vmem = pl.BlockSpec(memory_space=pltpu.MemorySpace.VMEM)

    out2d = pl.pallas_call(
        kernel,
        out_shape=jax.ShapeDtypeStruct((Cin, NLp), f32),
        in_specs=[vmem] * 9,
        out_specs=vmem,
        compiler_params=pltpu.CompilerParams(vmem_limit_bytes=32 * 1024 * 1024),
    )(xcol, tapm, xres,
      w2d(params["w1"]), col(params["g1"]), col(params["be1"]),
      w2d(params["w2"]), col(params["g2"]), col(params["be2"]))

    out = out2d.reshape(Cin, N, Lp)[:, :, :L]                    # drop lane tail
    return jnp.transpose(out, (1, 0, 2))                         # (N, C, L)


# ---------------- pure-JAX reference (for correctness check) ----------------
def reference_resblock(x, params, *, padding):
    def conv1d(x, w, b):
        y = jax.lax.conv_general_dilated(
            x, w, window_strides=(1,), padding=[(padding, padding)],
            dimension_numbers=("NCH", "OIH", "NCH"))
        return y + b[None, :, None]

    def bn(h, g, b):
        mu = jnp.mean(h, axis=(0, 2), keepdims=True)
        var = jnp.mean((h - mu) ** 2, axis=(0, 2), keepdims=True)
        return (h - mu) * jax.lax.rsqrt(var + EPS) * g[None, :, None] + b[None, :, None]

    h = _elu(bn(conv1d(x, params["w1"], params["b1"]), params["g1"], params["be1"]))
    o = bn(conv1d(h, params["w2"], params["b2"]), params["g2"], params["be2"])
    return _elu(o + x)


if __name__ == "__main__":
    # ResBlock(in_channels=8, out_channels=8, kernel_size=3, stride=1, padding=1)
    N, C, L, K, PAD = 2, 8, 16, 3, 1

    key = jax.random.PRNGKey(0)
    ks = jax.random.split(key, 9)
    params = {
        "w1": 0.1 * jax.random.normal(ks[0], (C, C, K), jnp.float32),
        "b1": 0.1 * jax.random.normal(ks[1], (C,), jnp.float32),
        "g1": 1.0 + 0.1 * jax.random.normal(ks[2], (C,), jnp.float32),
        "be1": 0.1 * jax.random.normal(ks[3], (C,), jnp.float32),
        "w2": 0.1 * jax.random.normal(ks[4], (C, C, K), jnp.float32),
        "b2": 0.1 * jax.random.normal(ks[5], (C,), jnp.float32),
        "g2": 1.0 + 0.1 * jax.random.normal(ks[6], (C,), jnp.float32),
        "be2": 0.1 * jax.random.normal(ks[7], (C,), jnp.float32),
    }
    x = jax.random.normal(ks[8], (N, C, L), jnp.float32)

    fwd = jax.jit(functools.partial(resblock_forward, padding=PAD))
    out = jax.block_until_ready(fwd(x, params))
    ref = jax.block_until_ready(reference_resblock(x, params, padding=PAD))

    assert out.shape == (N, C, L) and out.dtype == jnp.float32
    # bf16 MXU operands (f32 accumulate) -> relaxed tolerance vs the f32 reference.
    # Conv biases are intentionally omitted in the kernel: training-mode BN mean
    # subtraction cancels them exactly.
    err = float(jnp.max(jnp.abs(out - ref)))
    assert jnp.allclose(out, ref, atol=3e-2, rtol=3e-2), err
    print("KERNEL_OK")
</pallas_src>

<mosaic_0001>
module attributes {stable_mosaic.version = 11 : i64} {
  func.func @kernel(%arg0: memref<24x256xbf16, #tpu.memory_space<vmem>>, %arg1: memref<3x1x256xf32, #tpu.memory_space<vmem>>, %arg2: memref<8x256xf32, #tpu.memory_space<vmem>>, %arg3: memref<8x24xbf16, #tpu.memory_space<vmem>>, %arg4: memref<8x1xf32, #tpu.memory_space<vmem>>, %arg5: memref<8x1xf32, #tpu.memory_space<vmem>>, %arg6: memref<8x24xbf16, #tpu.memory_space<vmem>>, %arg7: memref<8x1xf32, #tpu.memory_space<vmem>>, %arg8: memref<8x1xf32, #tpu.memory_space<vmem>>, %arg9: memref<8x256xf32, #tpu.memory_space<vmem>>) attributes {dimension_semantics = [], scalar_prefetch = 0 : i64, scratch_operands = 0 : i64, tpu.core_type = #tpu.core_type<tc>} {
    %c0 = arith.constant 0 : index
    %c0_0 = arith.constant 0 : index
    %0 = vector.load %arg3[%c0, %c0_0] : memref<8x24xbf16, #tpu.memory_space<vmem>>, vector<8x24xbf16>
    %c0_1 = arith.constant 0 : index
    %c0_2 = arith.constant 0 : index
    %1 = vector.load %arg0[%c0_1, %c0_2] : memref<24x256xbf16, #tpu.memory_space<vmem>>, vector<24x256xbf16>
    %cst = arith.constant dense<0.000000e+00> : vector<8x256xf32>
    %2 = tpu.matmul %0, %1, %cst {dimension_numbers = #tpu.dot_dimension_numbers<[1], [0], [0], [1], [0, 0, 1, 1], [], []>} : vector<8x24xbf16>, vector<24x256xbf16>, vector<8x256xf32> -> vector<8x256xf32>
    %c0_3 = arith.constant 0 : index
    %c0_4 = arith.constant 0 : index
    %3 = vector.load %arg4[%c0_3, %c0_4] : memref<8x1xf32, #tpu.memory_space<vmem>>, vector<8x1xf32>
    %c0_5 = arith.constant 0 : index
    %c0_6 = arith.constant 0 : index
    %4 = vector.load %arg5[%c0_5, %c0_6] : memref<8x1xf32, #tpu.memory_space<vmem>>, vector<8x1xf32>
    %cst_7 = arith.constant dense<0.000000e+00> : vector<8xf32>
    %5 = vector.multi_reduction <add>, %2, %cst_7 [1] : vector<8x256xf32> to vector<8xf32>
    %6 = vector.shape_cast %5 : vector<8xf32> to vector<8x1xf32>
    %cst_8 = arith.constant 3.125000e-02 : f32
    %7 = vector.broadcast %cst_8 : f32 to vector<8x1xf32>
    %8 = arith.mulf %6, %7 : vector<8x1xf32>
    %9 = arith.mulf %2, %2 : vector<8x256xf32>
    %cst_9 = arith.constant dense<0.000000e+00> : vector<8xf32>
    %10 = vector.multi_reduction <add>, %9, %cst_9 [1] : vector<8x256xf32> to vector<8xf32>
    %11 = vector.shape_cast %10 : vector<8xf32> to vector<8x1xf32>
    %cst_10 = arith.constant 3.125000e-02 : f32
    %12 = vector.broadcast %cst_10 : f32 to vector<8x1xf32>
    %13 = arith.mulf %11, %12 : vector<8x1xf32>
    %14 = arith.mulf %8, %8 : vector<8x1xf32>
    %15 = arith.subf %13, %14 : vector<8x1xf32>
    %cst_11 = arith.constant 9.99999974E-6 : f32
    %16 = vector.broadcast %cst_11 : f32 to vector<8x1xf32>
    %17 = arith.addf %15, %16 : vector<8x1xf32>
    %18 = math.rsqrt %17 : vector<8x1xf32>
    %19 = arith.mulf %3, %18 : vector<8x1xf32>
    %20 = arith.mulf %8, %19 : vector<8x1xf32>
    %21 = arith.subf %4, %20 : vector<8x1xf32>
    %22 = vector.broadcast %19 : vector<8x1xf32> to vector<8x256xf32>
    %23 = arith.mulf %2, %22 : vector<8x256xf32>
    %24 = vector.broadcast %21 : vector<8x1xf32> to vector<8x256xf32>
    %25 = arith.addf %23, %24 : vector<8x256xf32>
    %cst_12 = arith.constant 0.000000e+00 : f32
    %26 = vector.broadcast %cst_12 : f32 to vector<8x256xf32>
    %27 = arith.cmpf ogt, %25, %26 : vector<8x256xf32>
    %cst_13 = arith.constant 0.000000e+00 : f32
    %28 = vector.broadcast %cst_13 : f32 to vector<8x256xf32>
    %29 = arith.minimumf %25, %28 : vector<8x256xf32>
    %30 = math.exp %29 : vector<8x256xf32>
    %cst_14 = arith.constant 1.000000e+00 : f32
    %31 = vector.broadcast %cst_14 : f32 to vector<8x256xf32>
    %32 = arith.subf %30, %31 : vector<8x256xf32>
    %33 = arith.select %27, %25, %32 : vector<8x256xi1>, vector<8x256xf32>
    %c1_i32 = arith.constant 1 : i32
    %34 = tpu.dynamic_rotate %33 by %c1_i32 dim 1 : vector<8x256xf32>, i32 -> vector<8x256xf32>
    %c0_15 = arith.constant 0 : index
    %c0_16 = arith.constant 0 : index
    %c0_17 = arith.constant 0 : index
    %35 = vector.load %arg1[%c0_15, %c0_16, %c0_17] : memref<3x1x256xf32, #tpu.memory_space<vmem>>, vector<1x1x256xf32>
    %36 = vector.shape_cast %35 : vector<1x1x256xf32> to vector<1x256xf32>
    %37 = vector.broadcast %36 : vector<1x256xf32> to vector<8x256xf32>
    %38 = arith.mulf %34, %37 : vector<8x256xf32>
    %c1 = arith.constant 1 : index
    %c0_18 = arith.constant 0 : index
    %c0_19 = arith.constant 0 : index
    %39 = vector.load %arg1[%c1, %c0_18, %c0_19] : memref<3x1x256xf32, #tpu.memory_space<vmem>>, vector<1x1x256xf32>
    %40 = vector.shape_cast %39 : vector<1x1x256xf32> to vector<1x256xf32>
    %41 = vector.broadcast %40 : vector<1x256xf32> to vector<8x256xf32>
    %42 = arith.mulf %33, %41 : vector<8x256xf32>
    %c255_i32 = arith.constant 255 : i32
    %43 = tpu.dynamic_rotate %33 by %c255_i32 dim 1 : vector<8x256xf32>, i32 -> vector<8x256xf32>
    %c2 = arith.constant 2 : index
    %c0_20 = arith.constant 0 : index
    %c0_21 = arith.constant 0 : index
    %44 = vector.load %arg1[%c2, %c0_20, %c0_21] : memref<3x1x256xf32, #tpu.memory_space<vmem>>, vector<1x1x256xf32>
    %45 = vector.shape_cast %44 : vector<1x1x256xf32> to vector<1x256xf32>
    %46 = vector.broadcast %45 : vector<1x256xf32> to vector<8x256xf32>
    %47 = arith.mulf %43, %46 : vector<8x256xf32>
    %48 = tpu.concatenate %38, %42, %47 in 0 : vector<8x256xf32>, vector<8x256xf32>, vector<8x256xf32> -> vector<24x256xf32>
    %49 = arith.truncf %48 : vector<24x256xf32> to vector<24x256xbf16>
    %c0_22 = arith.constant 0 : index
    %c0_23 = arith.constant 0 : index
    %50 = vector.load %arg6[%c0_22, %c0_23] : memref<8x24xbf16, #tpu.memory_space<vmem>>, vector<8x24xbf16>
    %cst_24 = arith.constant dense<0.000000e+00> : vector<8x256xf32>
    %51 = tpu.matmul %50, %49, %cst_24 {dimension_numbers = #tpu.dot_dimension_numbers<[1], [0], [0], [1], [0, 0, 1, 1], [], []>} : vector<8x24xbf16>, vector<24x256xbf16>, vector<8x256xf32> -> vector<8x256xf32>
    %c0_25 = arith.constant 0 : index
    %c0_26 = arith.constant 0 : index
    %52 = vector.load %arg7[%c0_25, %c0_26] : memref<8x1xf32, #tpu.memory_space<vmem>>, vector<8x1xf32>
    %c0_27 = arith.constant 0 : index
    %c0_28 = arith.constant 0 : index
    %53 = vector.load %arg8[%c0_27, %c0_28] : memref<8x1xf32, #tpu.memory_space<vmem>>, vector<8x1xf32>
    %cst_29 = arith.constant dense<0.000000e+00> : vector<8xf32>
    %54 = vector.multi_reduction <add>, %51, %cst_29 [1] : vector<8x256xf32> to vector<8xf32>
    %55 = vector.shape_cast %54 : vector<8xf32> to vector<8x1xf32>
    %cst_30 = arith.constant 3.125000e-02 : f32
    %56 = vector.broadcast %cst_30 : f32 to vector<8x1xf32>
    %57 = arith.mulf %55, %56 : vector<8x1xf32>
    %58 = arith.mulf %51, %51 : vector<8x256xf32>
    %cst_31 = arith.constant dense<0.000000e+00> : vector<8xf32>
    %59 = vector.multi_reduction <add>, %58, %cst_31 [1] : vector<8x256xf32> to vector<8xf32>
    %60 = vector.shape_cast %59 : vector<8xf32> to vector<8x1xf32>
    %cst_32 = arith.constant 3.125000e-02 : f32
    %61 = vector.broadcast %cst_32 : f32 to vector<8x1xf32>
    %62 = arith.mulf %60, %61 : vector<8x1xf32>
    %63 = arith.mulf %57, %57 : vector<8x1xf32>
    %64 = arith.subf %62, %63 : vector<8x1xf32>
    %cst_33 = arith.constant 9.99999974E-6 : f32
    %65 = vector.broadcast %cst_33 : f32 to vector<8x1xf32>
    %66 = arith.addf %64, %65 : vector<8x1xf32>
    %67 = math.rsqrt %66 : vector<8x1xf32>
    %68 = arith.mulf %52, %67 : vector<8x1xf32>
    %69 = arith.mulf %57, %68 : vector<8x1xf32>
    %70 = arith.subf %53, %69 : vector<8x1xf32>
    %71 = vector.broadcast %68 : vector<8x1xf32> to vector<8x256xf32>
    %72 = arith.mulf %51, %71 : vector<8x256xf32>
    %73 = vector.broadcast %70 : vector<8x1xf32> to vector<8x256xf32>
    %74 = arith.addf %72, %73 : vector<8x256xf32>
    %c0_34 = arith.constant 0 : index
    %c0_35 = arith.constant 0 : index
    %75 = vector.load %arg2[%c0_34, %c0_35] : memref<8x256xf32, #tpu.memory_space<vmem>>, vector<8x256xf32>
    %76 = arith.addf %74, %75 : vector<8x256xf32>
    %cst_36 = arith.constant 0.000000e+00 : f32
    %77 = vector.broadcast %cst_36 : f32 to vector<8x256xf32>
    %78 = arith.cmpf ogt, %76, %77 : vector<8x256xf32>
    %cst_37 = arith.constant 0.000000e+00 : f32
    %79 = vector.broadcast %cst_37 : f32 to vector<8x256xf32>
    %80 = arith.minimumf %76, %79 : vector<8x256xf32>
    %81 = math.exp %80 : vector<8x256xf32>
    %cst_38 = arith.constant 1.000000e+00 : f32
    %82 = vector.broadcast %cst_38 : f32 to vector<8x256xf32>
    %83 = arith.subf %81, %82 : vector<8x256xf32>
    %84 = arith.select %78, %76, %83 : vector<8x256xi1>, vector<8x256xf32>
    %c0_39 = arith.constant 0 : index
    %c0_40 = arith.constant 0 : index
    %85 = vector.load %arg9[%c0_39, %c0_40] : memref<8x256xf32, #tpu.memory_space<vmem>>, vector<8x256xf32>
    tpu.vector_store %arg9[%c0_39, %c0_40], %84 {strides = array<i32>} : memref<8x256xf32, #tpu.memory_space<vmem>>, vector<8x256xf32>,
    return
  }
}

</mosaic_0001>

<llo_original>
// kernel: tile.22
$region0: #{tile.22}
  #allocation0 [shape = 's32[1]{0}', space=sflag, size = 0x4, scoped, tag = 'scoped memory for tile.22']
  %s0 = inlined_call_operand.vmem [shape: pred[128], index: 0, kind: input, shape index: {}]
  %s1 = inlined_call_operand.vmem [shape: pred[2,128], index: 1, kind: output, shape index: {}]
  // Predicated region
  $region2: #{tile.22} parent=0 // pred_check
    _
  $region3: #{tile.22} parent=0 // pred_check_branch
    %3 = sbr.rel (0) target = $region5
  $region4: #{tile.22} parent=0 // pred_region
    _
  $region5: #{tile.22} parent=0 // pred_fallthru
    _
  %v4 = vld [vmem:[%s0] ss:$0 sm:$0xff]
  %v6 = vshra.s32 %v4, 0
  %v7 = vand.u32 %v6, 255
  %v8 = vpack.c.b16 0, %v7
  %v9 = vpack.c.b8 0, %v8
  %11 = vst [vmem:[%s1] sm:$0x1] %v9

// kernel: resblock_forward.1
$region0: #{resblock_forward.1}
  #allocation0 [shape = 'u32[]', space=smem, size = 0x4, offset = 0x4, fixed_abs, tag = 'smem constant byte address 0x4 - core index']
  #allocation1 [shape = 'u32[144,128]{1,0:T(1,128)}', space=vmem, size = 0x12000, scoped, tag = 'internal scratch']
  %s0 = inlined_call_operand.vmem [shape: bf16[24,256], index: 0, kind: input, shape index: {}]
  %s1 = inlined_call_operand.vmem [shape: f32[3,1,256], index: 1, kind: input, shape index: {}]
  %s2 = inlined_call_operand.vmem [shape: f32[8,256], index: 2, kind: input, shape index: {}]
  %s3 = inlined_call_operand.vmem [shape: bf16[8,24], index: 3, kind: input, shape index: {}]
  %s4 = inlined_call_operand.vmem [shape: f32[8,1], index: 4, kind: input, shape index: {}]
  %s5 = inlined_call_operand.vmem [shape: f32[8,1], index: 5, kind: input, shape index: {}]
  %s6 = inlined_call_operand.vmem [shape: bf16[8,24], index: 6, kind: input, shape index: {}]
  %s7 = inlined_call_operand.vmem [shape: f32[8,1], index: 7, kind: input, shape index: {}]
  %s8 = inlined_call_operand.vmem [shape: f32[8,1], index: 8, kind: input, shape index: {}]
  %s9 = inlined_call_operand.vmem [shape: f32[8,256], index: 9, kind: output, shape index: {}]
  %s10 = sld [smem:[#allocation0]]
  $region46: #{resblock_forward.1} parent=0
    _
  %s12 = ssub.s32 1, %s10
  %s13 = scalar_select 0, %s12, %s10
  // Predicated region
  $region2: #{resblock_forward.1} parent=0 // pred_check
    _
  $region3: #{resblock_forward.1} parent=0 // pred_check_branch
    %15 = sbr.rel (0) target = $region5
  $region4: #{resblock_forward.1} parent=0 // pred_region
    _
  $region5: #{resblock_forward.1} parent=0 // pred_fallthru
    _
  // Predicated region
  $region6: #{resblock_forward.1} parent=0 // pred_check
    _
  $region7: #{resblock_forward.1} parent=0 // pred_check_branch
    %17 = sbr.rel (0) target = $region9
  $region8: #{resblock_forward.1} parent=0 // pred_region
    _
  $region9: #{resblock_forward.1} parent=0 // pred_fallthru
    _
  // Predicated region
  $region10: #{resblock_forward.1} parent=0 // pred_check
    _
  $region11: #{resblock_forward.1} parent=0 // pred_check_branch
    %19 = sbr.rel (0) target = $region13
  $region12: #{resblock_forward.1} parent=0 // pred_region
    _
  $region13: #{resblock_forward.1} parent=0 // pred_fallthru
    _
  // Predicated region
  $region14: #{resblock_forward.1} parent=0 // pred_check
    _
  $region15: #{resblock_forward.1} parent=0 // pred_check_branch
    %21 = sbr.rel (0) target = $region17
  $region16: #{resblock_forward.1} parent=0 // pred_region
    _
  $region17: #{resblock_forward.1} parent=0 // pred_fallthru
    _
  // Predicated region
  $region18: #{resblock_forward.1} parent=0 // pred_check
    _
  $region19: #{resblock_forward.1} parent=0 // pred_check_branch
    %23 = sbr.rel (0) target = $region21
  $region20: #{resblock_forward.1} parent=0 // pred_region
    _
  $region21: #{resblock_forward.1} parent=0 // pred_fallthru
    _
  // Predicated region
  $region22: #{resblock_forward.1} parent=0 // pred_check
    _
  $region23: #{resblock_forward.1} parent=0 // pred_check_branch
    %25 = sbr.rel (0) target = $region25
  $region24: #{resblock_forward.1} parent=0 // pred_region
    _
  $region25: #{resblock_forward.1} parent=0 // pred_fallthru
    _
  // Predicated region
  $region26: #{resblock_forward.1} parent=0 // pred_check
    _
  $region27: #{resblock_forward.1} parent=0 // pred_check_branch
    %27 = sbr.rel (0) target = $region29
  $region28: #{resblock_forward.1} parent=0 // pred_region
    _
  $region29: #{resblock_forward.1} parent=0 // pred_fallthru
    _
  // Predicated region
  $region30: #{resblock_forward.1} parent=0 // pred_check
    _
  $region31: #{resblock_forward.1} parent=0 // pred_check_branch
    %29 = sbr.rel (0) target = $region33
  $region32: #{resblock_forward.1} parent=0 // pred_region
    _
  $region33: #{resblock_forward.1} parent=0 // pred_fallthru
    _
  // Predicated region
  $region34: #{resblock_forward.1} parent=0 // pred_check
    _
  $region35: #{resblock_forward.1} parent=0 // pred_check_branch
    %31 = sbr.rel (0) target = $region37
  $region36: #{resblock_forward.1} parent=0 // pred_region
    _
  $region37: #{resblock_forward.1} parent=0 // pred_fallthru
    _
  %v33 = vld [vmem:[%s3] sm:$0xf]
  %v34 = vld [vmem:[%s0] sm:$0xff]
  %v35 = vld [vmem:[%s0 + $0x8] sm:$0xff]
  %v36 = vld [vmem:[%s0 + $0x10] sm:$0xff]
  %v40 = vunpack.c.l.b16 %v34
  %v41 = vunpack.c.h.b16 %v34
  %v42 = vunpack.c.l.b16 %v35
  %v43 = vunpack.c.h.b16 %v35
  %v44 = vunpack.c.l.b16 %v36
  %v45 = vunpack.c.h.b16 %v36
  %v46 = vpack.c.b16 %v42, %v40
  %v47 = vpack.c.b16 %v43, %v41
  %v48 = vpack.c.b16 %v44, %v44
  %v49 = vpack.c.b16 %v45, %v45
  %vm52 = vcmask 195584
  %v54 = vsel %vm52, %v33, 0
  %vm56 = vcmask 1043456
  %v58 = vsel %vm56, %v48, 0
  %v61 = vsel %vm56, %v49, 0
  %63 = vmatprep.subr.bf16.mxu0 %v47
  %64 = vmatpush1.bf16.msra.mxu0 %v46
  %65 = vmatprep.subr.bf16.mxu0 %v61
  %66 = vmatpush1.bf16.msra.mxu0 %v58
  %67 = vmatprep.subr.bf16.mxu0 0
  %68 = vmatpush1.bf16.msra.mxu0 0
  %69 = vmatprep.subr.bf16.mxu0 0
  %70 = vmatpush1.bf16.msra.mxu0 0
  %71 = vmatprep.subr.bf16.mxu0 0
  %72 = vmatpush1.bf16.msra.mxu0 0
  %73 = vmatprep.subr.bf16.mxu0 0
  %74 = vmatpush1.bf16.msra.mxu0 0
  %75 = vmatprep.subr.bf16.mxu0 0
  %76 = vmatpush1.bf16.msra.mxu0 0
  %77 = vmatprep.subr.bf16.mxu0 0
  %78 = vmatpush1.bf16.msra.mxu0 0
  %79 = vmatprep.subr.bf16.mxu0 0
  %80 = vmatpush1.bf16.msra.mxu0 0
  %81 = vmatprep.subr.bf16.mxu0 0
  %82 = vmatpush1.bf16.msra.mxu0 0
  %83 = vmatprep.subr.bf16.mxu0 0
  %84 = vmatpush1.bf16.msra.mxu0 0
  %85 = vmatprep.subr.bf16.mxu0 0
  %86 = vmatpush1.bf16.msra.mxu0 0
  %87 = vmatprep.subr.bf16.mxu0 0
  %88 = vmatpush1.bf16.msra.mxu0 0
  %89 = vmatprep.subr.bf16.mxu0 0
  %90 = vmatpush1.bf16.msra.mxu0 0
  %91 = vmatprep.subr.bf16.mxu0 0
  %92 = vmatpush1.bf16.msra.mxu0 0
  %93 = vmatprep.subr.bf16.mxu0 0
  %94 = vmatpush1.bf16.msra.mxu0 0
  %95 = vmatprep.mubr.bf16.mxu0 0
  %96 = vmatmul.mubr.bf16.gmra.mrb[0].mxu0 %v54
  %v97 = vpop.f32.mrb[0].mxu0
  %v98 = vadd.f32 0.0, %v97
  %v99 = vpop.f32.mrb[0].mxu0
  %v100 = vadd.f32 0.0, %v99
  %v101 = vpop.f32.mrb[0].mxu0
  %v102 = vpop.f32.mrb[0].mxu0
  %103 = vdwg.mxu0
  %v104 = vld [vmem:[%s4] sm:$0xff]
  %v105 = vld [vmem:[%s5] sm:$0xff]
  %v106 = vadd.f32 %v98, %v100
  %107 = vadd.xlane.f32.xlu0 %v106
  %v108 = vpop.xlane.xlu0 %107
  %v109 = vmul.f32 %v108, 0.03125
  %v110 = vmul.f32 %v98, %v98
  %v111 = vmul.f32 %v100, %v100
  %v112 = vadd.f32 %v110, %v111
  %113 = vadd.xlane.f32.xlu0 %v112
  %v114 = vpop.xlane.xlu0 %113
  %v115 = vmul.f32 %v114, 0.03125
  %v116 = vmul.f32 %v109, %v109
  %v117 = vsub.f32 %v115, %v116
  %v118 = vadd.f32 %v117, 1e-05
  %v119 = vrsqrt.pop %v118
  %v120 = vmul.f32 %v104, %v119
  %v121 = vmul.f32 %v109, %v120
  %v122 = vsub.f32 %v105, %v121
  %124 = vset.pattern.permute.xlu0 0
  %125 = vperm.xlu0 %124, %v120
  %v126 = vpop.permute.xlu0 %125
  %v128 = vmul.f32 %v98, %v126
  %v129 = vmul.f32 %v100, %v126
  %131 = vset.pattern.permute.xlu0 0
  %132 = vperm.xlu0 %131, %v122
  %v133 = vpop.permute.xlu0 %132
  %v135 = vadd.f32 %v128, %v133
  %v136 = vadd.f32 %v129, %v133
  %vm137 = vcmp.gt.f32.partialorder %v135, 0.0
  %vm138 = vcmp.gt.f32.partialorder %v136, 0.0
  %v139 = vmin.f32 %v135, 0.0
  %v140 = vmin.f32 %v136, 0.0
  %v141 = vmul.f32 %v139, 1.442695
  %v142 = vpow.pop %v141
  %v143 = vmul.f32 %v140, 1.442695
  %v144 = vpow.pop %v143
  %v145 = vsub.f32 %v142, 1.0
  %v146 = vsub.f32 %v144, 1.0
  %v147 = vsel %vm137, %v135, %v145
  %v148 = vsel %vm138, %v136, %v146
  %149 = vrot.lane.b32.xlu0 %v147, 1
  %v150 = vpop.permute.xlu0 %149
  %151 = vrot.lane.b32.xlu0 %v148, 1
  %v152 = vpop.permute.xlu0 %151
  %v153 = vlaneseq
  %v154 = vand.u32 %v153, 127
  %vm155 = vcmp.lt.s32.totalorder %v154, 1
  %v156 = vsel %vm155, %v150, %v152
  %v157 = vsel %vm155, %v152, %v150
  %v158 = vld [vmem:[%s1] sm:$0x3]
  %v160 = vlaneseq
  %v161 = vshrl.u32 %v160, 7
  %v162 = vsub.s32 0, %v161
  %v163 = vrot.slane %v158, %v162
  %v164 = vlaneseq
  %v165 = vshrl.u32 %v164, 7
  %v166 = vsub.s32 1, %v165
  %v167 = vrot.slane %v158, %v166
  %v170 = vmul.f32 %v157, %v163
  %v171 = vmul.f32 %v156, %v167
  %s172 = scalar_lea.vmem %s1, 2
  %v173 = vld [vmem:[%s172] sm:$0x3]
  %v175 = vlaneseq
  %v176 = vshrl.u32 %v175, 7
  %v177 = vsub.s32 0, %v176
  %v178 = vrot.slane %v173, %v177
  %v179 = vlaneseq
  %v180 = vshrl.u32 %v179, 7
  %v181 = vsub.s32 1, %v180
  %v182 = vrot.slane %v173, %v181
  %v185 = vmul.f32 %v147, %v178
  %v186 = vmul.f32 %v148, %v182
  %187 = vrot.lane.b32.xlu0 %v147, 127
  %v188 = vpop.permute.xlu0 %187
  %189 = vrot.lane.b32.xlu0 %v148, 127
  %v190 = vpop.permute.xlu0 %189
  %vm191 = vcmp.lt.s32.totalorder %v154, 127
  %v192 = vsel %vm191, %v188, %v190
  %v193 = vsel %vm191, %v190, %v188
  %s194 = scalar_lea.vmem %s1, 4
  %v195 = vld [vmem:[%s194] sm:$0x3]
  %v197 = vlaneseq
  %v198 = vshrl.u32 %v197, 7
  %v199 = vsub.s32 0, %v198
  %v200 = vrot.slane %v195, %v199
  %v201 = vlaneseq
  %v202 = vshrl.u32 %v201, 7
  %v203 = vsub.s32 1, %v202
  %v204 = vrot.slane %v195, %v203
  %v207 = vmul.f32 %v192, %v200
  %v208 = vmul.f32 %v193, %v204
  %v209 = vpack.c.bf16 %v185, %v170
  %v210 = vpack.c.bf16 %v186, %v171
  %v211 = vpack.c.bf16 %v207, %v207
  %v212 = vpack.c.bf16 %v208, %v208
  %v213 = vld [vmem:[%s6] sm:$0xf]
  %v215 = vsel %vm52, %v213, 0
  %v218 = vsel %vm56, %v211, 0
  %v221 = vsel %vm56, %v212, 0
  %223 = vmatprep.subr.bf16.mxu0 %v210
  %224 = vmatpush1.bf16.msra.mxu0 %v209
  %225 = vmatprep.subr.bf16.mxu0 %v221
  %226 = vmatpush1.bf16.msra.mxu0 %v218
  %227 = vmatprep.subr.bf16.mxu0 0
  %228 = vmatpush1.bf16.msra.mxu0 0
  %229 = vmatprep.subr.bf16.mxu0 0
  %230 = vmatpush1.bf16.msra.mxu0 0
  %231 = vmatprep.subr.bf16.mxu0 0
  %232 = vmatpush1.bf16.msra.mxu0 0
  %233 = vmatprep.subr.bf16.mxu0 0
  %234 = vmatpush1.bf16.msra.mxu0 0
  %235 = vmatprep.subr.bf16.mxu0 0
  %236 = vmatpush1.bf16.msra.mxu0 0
  %237 = vmatprep.subr.bf16.mxu0 0
  %238 = vmatpush1.bf16.msra.mxu0 0
  %239 = vmatprep.subr.bf16.mxu0 0
  %240 = vmatpush1.bf16.msra.mxu0 0
  %241 = vmatprep.subr.bf16.mxu0 0
  %242 = vmatpush1.bf16.msra.mxu0 0
  %243 = vmatprep.subr.bf16.mxu0 0
  %244 = vmatpush1.bf16.msra.mxu0 0
  %245 = vmatprep.subr.bf16.mxu0 0
  %246 = vmatpush1.bf16.msra.mxu0 0
  %247 = vmatprep.subr.bf16.mxu0 0
  %248 = vmatpush1.bf16.msra.mxu0 0
  %249 = vmatprep.subr.bf16.mxu0 0
  %250 = vmatpush1.bf16.msra.mxu0 0
  %251 = vmatprep.subr.bf16.mxu0 0
  %252 = vmatpush1.bf16.msra.mxu0 0
  %253 = vmatprep.subr.bf16.mxu0 0
  %254 = vmatpush1.bf16.msra.mxu0 0
  %255 = vmatprep.mubr.bf16.mxu0 0
  %256 = vmatmul.mubr.bf16.gmra.mrb[0].mxu0 %v215
  %v257 = vpop.f32.mrb[0].mxu0
  %v258 = vadd.f32 0.0, %v257
  %v259 = vpop.f32.mrb[0].mxu0
  %v260 = vadd.f32 0.0, %v259
  %v261 = vpop.f32.mrb[0].mxu0
  %v262 = vpop.f32.mrb[0].mxu0
  %263 = vdwg.mxu0
  %v264 = vld [vmem:[%s7] sm:$0xff]
  %v265 = vld [vmem:[%s8] sm:$0xff]
  %v266 = vadd.f32 %v258, %v260
  %267 = vadd.xlane.f32.xlu0 %v266
  %v268 = vpop.xlane.xlu0 %267
  %v269 = vmul.f32 %v268, 0.03125
  %v270 = vmul.f32 %v258, %v258
  %v271 = vmul.f32 %v260, %v260
  %v272 = vadd.f32 %v270, %v271
  %273 = vadd.xlane.f32.xlu0 %v272
  %v274 = vpop.xlane.xlu0 %273
  %v275 = vmul.f32 %v274, 0.03125
  %v276 = vmul.f32 %v269, %v269
  %v277 = vsub.f32 %v275, %v276
  %v278 = vadd.f32 %v277, 1e-05
  %v279 = vrsqrt.pop %v278
  %v280 = vmul.f32 %v264, %v279
  %v281 = vmul.f32 %v269, %v280
  %v282 = vsub.f32 %v265, %v281
  %284 = vset.pattern.permute.xlu0 0
  %285 = vperm.xlu0 %284, %v280
  %v286 = vpop.permute.xlu0 %285
  %v288 = vmul.f32 %v258, %v286
  %v289 = vmul.f32 %v260, %v286
  %291 = vset.pattern.permute.xlu0 0
  %292 = vperm.xlu0 %291, %v282
  %v293 = vpop.permute.xlu0 %292
  %v295 = vadd.f32 %v288, %v293
  %v296 = vadd.f32 %v289, %v293
  %v297 = vld [vmem:[%s2] sm:$0xff]
  %v298 = vld [vmem:[%s2 + $0x8] sm:$0xff]
  %v299 = vadd.f32 %v295, %v297
  %v300 = vadd.f32 %v296, %v298
  %vm301 = vcmp.gt.f32.partialorder %v299, 0.0
  %vm302 = vcmp.gt.f32.partialorder %v300, 0.0
  %v303 = vmin.f32 %v299, 0.0
  %v304 = vmin.f32 %v300, 0.0
  %v305 = vmul.f32 %v303, 1.442695
  %v306 = vpow.pop %v305
  %v307 = vmul.f32 %v304, 1.442695
  %v308 = vpow.pop %v307
  %v309 = vsub.f32 %v306, 1.0
  %v310 = vsub.f32 %v308, 1.0
  %v311 = vsel %vm301, %v299, %v309
  %v312 = vsel %vm302, %v300, %v310
  %313 = vst [vmem:[%s9] sm:$0xff] %v311
  %314 = vst [vmem:[%s9 + $0x8] sm:$0xff] %v312
  // Predicated region
  $region38: #{resblock_forward.1} parent=0 // pred_check
    _
  $region39: #{resblock_forward.1} parent=0 // pred_check_branch
    %316 = sbr.rel (0) target = $region41
  $region40: #{resblock_forward.1} parent=0 // pred_region
    _
  $region41: #{resblock_forward.1} parent=0 // pred_fallthru
    _
  // Predicated region
  $region42: #{resblock_forward.1} parent=0 // pred_check
    _
  $region43: #{resblock_forward.1} parent=0 // pred_check_branch
    %318 = sbr.rel (0) target = $region45
  $region44: #{resblock_forward.1} parent=0 // pred_region
    _
  $region45: #{resblock_forward.1} parent=0 // pred_fallthru
    _

</llo_original>
